<compile_context>
chip_gen: v7x
topology: tpu7x:2x2x1
jax: 0.10.0
libtpu: 0.0.40
codegen_flags: <defaults>
</compile_context>

<pallas_src>
import functools

import jax
import jax.numpy as jnp
from jax import lax
from jax.experimental import pallas as pl
from jax.experimental.pallas import tpu as pltpu

BN_EPS = 1e-5
CP = 128           # lane-padded channel width (single 128-lane channel block)
_ROW_TARGET = 128  # target sublane rows per MXU matmul / live f32 accumulator


def _round_up(v, m):
    return ((v + m - 1) // m) * m


def _pick_row_block(H, WP):
    """Largest divisor of H whose row-block (RB*WP sublanes) stays <= target."""
    rb = 1
    for cand in range(1, H + 1):
        if H % cand == 0 and cand * WP <= _ROW_TARGET:
            rb = cand
    return rb


# ---------------------------------------------------------------------------
# One-off probe: pin down pltpu.roll's shift convention (vs jnp.roll).
# ---------------------------------------------------------------------------
_ROLL_MATCHES_JNP = None


def _roll_matches_jnp():
    global _ROLL_MATCHES_JNP
    if _ROLL_MATCHES_JNP is None:
        x = jnp.arange(8 * 128, dtype=jnp.float32).reshape(8, 128)

        def k(x_ref, o_ref):
            o_ref[...] = pltpu.roll(x_ref[...], 1, axis=0)

        y = pl.pallas_call(
            k, out_shape=jax.ShapeDtypeStruct((8, 128), jnp.float32))(x)
        if bool(jnp.all(y == jnp.roll(x, 1, axis=0))):
            _ROLL_MATCHES_JNP = True
        elif bool(jnp.all(y == jnp.roll(x, -1, axis=0))):
            _ROLL_MATCHES_JNP = False
        else:
            raise RuntimeError("unexpected pltpu.roll semantics")
    return _ROLL_MATCHES_JNP


# ---------------------------------------------------------------------------
# Fused Bottleneck kernel
# ---------------------------------------------------------------------------
def _bottleneck_kernel(x_ref, w1_ref, b1_ref, w2_ref, b2_ref, w3_ref, b3_ref,
                       *rest, has_downsample, H, W, WP, RB, roll_like_jnp):
    if has_downsample:
        wd_ref, bd_ref, o_ref, h1_ref, h2_ref = rest
    else:
        o_ref, h1_ref, h2_ref = rest

    n_rows = RB * WP

    def shift_cols(r, dx):
        # out[p] must pick up R[p + dx - 1] (column shift within each WP row;
        # the wrapped/garbage columns are masked or discarded downstream).
        if dx == 1:
            return r
        s = (1 - dx) if roll_like_jnp else (dx - 1)
        return pltpu.roll(r, s % n_rows, axis=0)

    def conv_acc(src_ref, w_ref, r0):
        # src_ref: [H+2, WP, CP] bf16 (zero border rows/cols). Returns f32
        # [RB*WP, CP] holding padded-output rows r0..r0+RB-1.
        acc = None
        for dy in range(3):
            slab = src_ref[r0 + dy:r0 + dy + RB, :, :].reshape(n_rows, CP)
            for dx in range(3):
                r = jnp.dot(slab, w_ref[dy * 3 + dx],
                            preferred_element_type=jnp.float32)
                r = shift_cols(r, dx)
                acc = r if acc is None else acc + r
        return acc

    # Column-validity mask (hoisted once): cols 1..W are pixels, col 0 and
    # cols >= W+1 are the zero padding the next conv relies on.
    col = lax.broadcasted_iota(jnp.int32, (n_rows, 1), 0) % WP
    col_ok = jnp.logical_and(col >= 1, col <= W)

    # Border rows act as the conv zero padding.  Nothing else ever writes them;
    # re-zero per grid step (tiny) so it is also correct when the batch grid is
    # sharded across TensorCores.
    zrow = jnp.zeros((1, WP, CP), jnp.bfloat16)
    h1_ref[0:1] = zrow
    h1_ref[H + 1:H + 2] = zrow
    h2_ref[0:1] = zrow
    h2_ref[H + 1:H + 2] = zrow

    def conv_bn_relu(src_ref, w_ref, b_ref, dst_ref):
        for r0 in range(0, H, RB):
            v = conv_acc(src_ref, w_ref, r0) + b_ref[...]
            v = jnp.maximum(v, 0.0)
            v = jnp.where(col_ok, v, 0.0).astype(jnp.bfloat16)
            dst_ref[1 + r0:1 + r0 + RB, :, :] = v.reshape(RB, WP, CP)

    # conv1 + bn1 + relu -> h1 scratch (bf16, zero-bordered)
    conv_bn_relu(x_ref, w1_ref, b1_ref, h1_ref)
    # conv2 + bn2 + relu -> h2 scratch
    conv_bn_relu(h1_ref, w2_ref, b2_ref, h2_ref)

    # conv3 + bn3 + residual + relu, streamed straight into the output block.
    for r0 in range(0, H, RB):
        v = conv_acc(h2_ref, w3_ref, r0) + b3_ref[...]
        xs = x_ref[1 + r0:1 + r0 + RB, :, :].reshape(n_rows, CP)
        if has_downsample:
            ident = jnp.dot(xs, wd_ref[...],
                            preferred_element_type=jnp.float32) + bd_ref[...]
        else:
            ident = xs.astype(jnp.float32)
        o_ref[r0:r0 + RB, :, :] = jnp.maximum(v + ident, 0.0).reshape(RB, WP, CP)


@functools.partial(jax.jit, static_argnames=("cout", "roll_like_jnp"))
def _bottleneck_forward_impl(params, x_nchw, *, cout, roll_like_jnp):
    N, cin, H, W = x_nchw.shape
    assert cin <= CP and cout <= CP
    WP = _round_up(W + 2, 16)       # bf16 sublane tile = 16 rows -> aligned reshapes
    RB = _pick_row_block(H, WP)

    # NHWC, spatial + lane zero-pad, single f32->bf16 cast for all activations.
    x = jnp.transpose(x_nchw, (0, 2, 3, 1))
    x = jnp.pad(x, ((0, 0), (1, 1), (1, WP - (W + 1)), (0, CP - cin)))
    x = x.astype(jnp.bfloat16)

    has_ds = 'wd' in params
    kern = functools.partial(_bottleneck_kernel, has_downsample=has_ds,
                             H=H, W=W, WP=WP, RB=RB,
                             roll_like_jnp=roll_like_jnp)

    x_spec = pl.BlockSpec((None, H + 2, WP, CP), lambda n: (n, 0, 0, 0))
    w_spec = pl.BlockSpec((9, CP, CP), lambda n: (0, 0, 0))
    b_spec = pl.BlockSpec((1, CP), lambda n: (0, 0))
    wd_spec = pl.BlockSpec((CP, CP), lambda n: (0, 0))
    out_spec = pl.BlockSpec((None, H, WP, CP), lambda n: (n, 0, 0, 0))

    operands = [x, params['w1'], params['b1'], params['w2'], params['b2'],
                params['w3'], params['b3']]
    in_specs = [x_spec] + [w_spec, b_spec] * 3
    if has_ds:
        operands += [params['wd'], params['bd']]
        in_specs += [wd_spec, b_spec]

    flops_img = 2 * H * W * CP * CP * 27 + (2 * H * W * CP * CP if has_ds else 0)
    bytes_acc = (int(x.size) * 2 + N * H * WP * CP * 4
                 + sum(int(params[k].size) * 2 for k in params if k.startswith('w'))
                 + sum(int(params[k].size) * 4 for k in params if k.startswith('b')))

    out_pad = pl.pallas_call(
        kern,
        out_shape=jax.ShapeDtypeStruct((N, H, WP, CP), jnp.float32),
        grid=(N,),
        in_specs=in_specs,
        out_specs=out_spec,
        scratch_shapes=[pltpu.VMEM((H + 2, WP, CP), jnp.bfloat16),
                        pltpu.VMEM((H + 2, WP, CP), jnp.bfloat16)],
        compiler_params=pltpu.CompilerParams(
            dimension_semantics=("parallel",),
            vmem_limit_bytes=32 * 1024 * 1024),
        cost_estimate=pl.CostEstimate(flops=N * flops_img,
                                      transcendentals=0,
                                      bytes_accessed=bytes_acc),
    )(*operands)

    out = out_pad[:, :, 1:1 + W, :cout]
    return jnp.transpose(out, (0, 3, 1, 2))                 # back to NCHW


def bottleneck_forward(params, x_nchw, *, cout):
    """x_nchw: [N, Cin, H, W] f32 -> [N, cout, H, W] f32 (stride=1 block)."""
    return _bottleneck_forward_impl(params, x_nchw, cout=cout,
                                    roll_like_jnp=_roll_matches_jnp())


# ---------------------------------------------------------------------------
# Parameter construction / preparation (BN folding + lane padding, done once)
# ---------------------------------------------------------------------------
def _fold_bn(bn):
    gamma, beta, mean, var = bn
    scale = gamma / jnp.sqrt(var + BN_EPS)
    return scale, beta - mean * scale


def _prep_conv3x3(w, scale):
    # w: [Cout, Cin, 3, 3] -> [9, CP, CP] bf16, BN scale folded into Cout.
    cout, cin = w.shape[0], w.shape[1]
    assert cin <= CP and cout <= CP
    wf = w * scale[:, None, None, None]
    taps = jnp.transpose(wf, (2, 3, 1, 0)).reshape(9, cin, cout)   # [kh*3+kw, ci, co]
    taps = jnp.pad(taps, ((0, 0), (0, CP - cin), (0, CP - cout)))
    return taps.astype(jnp.bfloat16)


def _prep_conv1x1(w, scale):
    cout, cin = w.shape[0], w.shape[1]
    assert cin <= CP and cout <= CP
    wf = (w.reshape(cout, cin) * scale[:, None]).T                 # [Cin, Cout]
    wf = jnp.pad(wf, ((0, CP - cin), (0, CP - cout)))
    return wf.astype(jnp.bfloat16)


def _prep_bias(b):
    return jnp.pad(b, (0, CP - b.shape[0])).reshape(1, CP).astype(jnp.float32)


def init_raw_params(key, inplanes, planes, stride=1):
    """Mirrors Bottleneck.__init__ (groups=1, base_width=64, dilation=1)."""
    width = planes                      # int(planes * 64/64) * 1
    cout = planes * 4                   # expansion = 4
    keys = jax.random.split(key, 4)

    def kaiming(k, co, ci, kh, kw):
        fan_out = co * kh * kw
        std = (2.0 / fan_out) ** 0.5
        return std * jax.random.normal(k, (co, ci, kh, kw), jnp.float32)

    def bn_params(c):
        return (jnp.ones((c,), jnp.float32), jnp.zeros((c,), jnp.float32),
                jnp.zeros((c,), jnp.float32), jnp.ones((c,), jnp.float32))

    raw = {
        'w1': kaiming(keys[0], width, inplanes, 3, 3), 'bn1': bn_params(width),
        'w2': kaiming(keys[1], width, width, 3, 3),    'bn2': bn_params(width),
        'w3': kaiming(keys[2], cout, width, 3, 3),     'bn3': bn_params(cout),
    }
    if stride != 1 or inplanes != cout:
        raw['wd'] = kaiming(keys[3], cout, inplanes, 1, 1)
        raw['bnd'] = bn_params(cout)
    return raw


def prep_params(raw):
    p = {}
    for i in (1, 2, 3):
        s, b = _fold_bn(raw[f'bn{i}'])
        p[f'w{i}'] = _prep_conv3x3(raw[f'w{i}'], s)
        p[f'b{i}'] = _prep_bias(b)
    if 'wd' in raw:
        s, b = _fold_bn(raw['bnd'])
        p['wd'] = _prep_conv1x1(raw['wd'], s)
        p['bd'] = _prep_bias(b)
    return p


# ---------------------------------------------------------------------------
# Pure-JAX reference (XLA convs) for validation
# ---------------------------------------------------------------------------
def reference_forward(raw, x_nchw, stride=1):
    def conv(x, w, s, pad):
        return jax.lax.conv_general_dilated(
            x, w, window_strides=(s, s), padding=[(pad, pad), (pad, pad)],
            dimension_numbers=('NCHW', 'OIHW', 'NCHW'))

    def bn(x, p):
        sc, b = _fold_bn(p)
        return x * sc[None, :, None, None] + b[None, :, None, None]

    out = jax.nn.relu(bn(conv(x_nchw, raw['w1'], 1, 1), raw['bn1']))
    out = jax.nn.relu(bn(conv(out, raw['w2'], stride, 1), raw['bn2']))
    out = bn(conv(out, raw['w3'], 1, 1), raw['bn3'])
    if 'wd' in raw:
        identity = bn(conv(x_nchw, raw['wd'], stride, 0), raw['bnd'])
    else:
        identity = x_nchw
    return jax.nn.relu(out + identity)


if __name__ == "__main__":
    key = jax.random.PRNGKey(0)

    def run_case(case_key, inplanes, planes):
        pkey, xkey = jax.random.split(case_key)
        N, H, W = 2, 16, 16
        cout = planes * 4
        raw = init_raw_params(pkey, inplanes, planes, stride=1)
        params = prep_params(raw)
        x = jax.random.normal(xkey, (N, inplanes, H, W), jnp.float32)

        out = bottleneck_forward(params, x, cout=cout)
        jax.block_until_ready(out)
        assert out.shape == (N, cout, H, W) and out.dtype == jnp.float32

        ref = reference_forward(raw, x, stride=1)
        rel_err = float(jnp.max(jnp.abs(out - ref)) /
                        (jnp.max(jnp.abs(ref)) + 1e-6))
        assert rel_err < 0.02, f"mismatch vs reference: rel err {rel_err}"

    k1, k2 = jax.random.split(key)
    run_case(k1, inplanes=16, planes=8)   # downsample (1x1 conv + BN) residual
    run_case(k2, inplanes=32, planes=8)   # identity residual

    print("KERNEL_OK")
</pallas_src>

<mosaic_0001>
module attributes {stable_mosaic.version = 11 : i64} {
  func.func @k(%arg0: memref<8x128xf32, #tpu.memory_space<vmem>>, %arg1: memref<8x128xf32, #tpu.memory_space<vmem>>) attributes {dimension_semantics = [], scalar_prefetch = 0 : i64, scratch_operands = 0 : i64, tpu.core_type = #tpu.core_type<tc>} {
    %c0 = arith.constant 0 : index
    %c0_0 = arith.constant 0 : index
    %0 = vector.load %arg0[%c0, %c0_0] : memref<8x128xf32, #tpu.memory_space<vmem>>, vector<8x128xf32>
    %c1_i32 = arith.constant 1 : i32
    %1 = tpu.dynamic_rotate %0 by %c1_i32 dim 0 : vector<8x128xf32>, i32 -> vector<8x128xf32>
    %c0_1 = arith.constant 0 : index
    %c0_2 = arith.constant 0 : index
    %2 = vector.load %arg1[%c0_1, %c0_2] : memref<8x128xf32, #tpu.memory_space<vmem>>, vector<8x128xf32>
    tpu.vector_store %arg1[%c0_1, %c0_2], %1 {strides = array<i32>} : memref<8x128xf32, #tpu.memory_space<vmem>>, vector<8x128xf32>,
    return
  }
}

</mosaic_0001>

<llo_original>
// kernel: tpu_custom_call.1
$region0: #{tpu_custom_call.1}
  #allocation0 [shape = 'u32[]', space=smem, size = 0x4, offset = 0x4, fixed_abs, tag = 'smem constant byte address 0x4 - core index']
  #allocation1 [shape = 'u32[144,128]{1,0:T(1,128)}', space=vmem, size = 0x12000, scoped, tag = 'internal scratch']
  %s0 = inlined_call_operand.hbm [shape: f32[8,128], index: 0, kind: input, shape index: {}]
  %s1 = inlined_call_operand.hbm [shape: f32[8,128], index: 1, kind: output, shape index: {}]
  %s2 = sld [smem:[#allocation0]]
  $region18: #{tpu_custom_call.1} parent=0
    _
  %s4 = ssub.s32 1, %s2
  %s5 = scalar_select 0, %s4, %s2
  $region1: #{tpu_custom_call.1} parent=0
    #allocation2 [shape = 'u8[4096]{0}', space=vmem, size = 0x1000, scoped, tag = 'input window, operand 0, single buffered']
    #allocation3 [shape = 's32[1]{0}', space=sflag, size = 0x4, scoped, tag = 'scoped memory for tpu_custom_call.1']
    #allocation4 [shape = 's32[1]{0}', space=sflag, size = 0x4, scoped, tag = 'scoped memory for tpu_custom_call.1']
    #allocation5 [shape = 'u8[4096]{0}', space=vmem, size = 0x1000, scoped, tag = 'output window, operand 0, single buffered']
    %6 = vsyncpa [#allocation3], 0
    %7 = vsyncpa [#allocation4], 0
    // Predicated region
    $region2: #{tpu_custom_call.1} parent=1 // pred_check
      _
    $region3: #{tpu_custom_call.1} parent=1 // pred_check_branch
      %9 = sbr.rel (0) target = $region5
    $region4: #{tpu_custom_call.1} parent=1 // pred_region
      %s11 = ssub.s32 128, 128
      %12 = vsyncadd [#allocation3], %s11
      %s14 = sshll.u32 [#allocation2], 4
      %s15 = int_to_ptr.vmem [resolvable:$true] %s14
      %17 = dma.hbm_to_vmem [thread:$0]  %s0, 128, %s15, [#allocation3]
    $region5: #{tpu_custom_call.1} parent=1 // pred_fallthru
      _
    // Predicated region
    $region6: #{tpu_custom_call.1} parent=1 // pred_check
      _
    $region7: #{tpu_custom_call.1} parent=1 // pred_check_branch
      %19 = sbr.rel (0) target = $region9
    $region8: #{tpu_custom_call.1} parent=1 // pred_region
      %20 = dma.done [#allocation3], 128
    $region9: #{tpu_custom_call.1} parent=1 // pred_fallthru
      _
    %v21 = vld [vmem:[#allocation2] sm:$0xff]
    %v22 = vrot.slane %v21, 7
    %23 = vst [vmem:[#allocation5] sm:$0xff] %v22
    // Predicated region
    $region10: #{tpu_custom_call.1} parent=1 // pred_check
      _
    $region11: #{tpu_custom_call.1} parent=1 // pred_check_branch
      %25 = sbr.rel (0) target = $region13
    $region12: #{tpu_custom_call.1} parent=1 // pred_region
      %s27 = ssub.s32 128, 128
      %28 = vsyncadd [#allocation4], %s27
      %s30 = sshll.u32 [#allocation5], 4
      %s31 = int_to_ptr.vmem [resolvable:$true] %s30
      %33 = dma.vmem_to_hbm [thread:$0]  %s31, 128, %s1, [#allocation4]
    $region13: #{tpu_custom_call.1} parent=1 // pred_fallthru
      _
    // Predicated region
    $region14: #{tpu_custom_call.1} parent=1 // pred_check
      _
    $region15: #{tpu_custom_call.1} parent=1 // pred_check_branch
      %35 = sbr.rel (0) target = $region17
    $region16: #{tpu_custom_call.1} parent=1 // pred_region
      %36 = dma.done [#allocation4], 128
    $region17: #{tpu_custom_call.1} parent=1 // pred_fallthru
      _
    %37 = vsyncpa [#allocation3], 1
    %38 = vsyncpa [#allocation4], 1

</llo_original>
